<compile_context>
chip_gen: v7x
topology: tpu7x:2x2x1
jax: 0.10.0
libtpu: 0.0.40
codegen_flags: <defaults>
</compile_context>

<pallas_src>
import math
import functools

import jax
import jax.numpy as jnp
from jax.experimental import pallas as pl
from jax.experimental.pallas import tpu as pltpu

# Model hyper-parameters (small, consistent with the module's __init__).
D_MODEL = 32
D_K = 8
D_V = 8
N_HEADS = 4
BATCH = 2
SEQ = 8
LN_EPS = 1e-5  # nn.LayerNorm default


def _mha_kernel(acts_ref, p_ref, out_ref, *,
                batch, seq, n_heads, d_k, d_v, d_model):
    f32 = jnp.float32
    bs = batch * seq             # 16 rows per (batch*seq)
    hbs = n_heads * bs           # 64 head-major rows
    HD = n_heads * d_model       # 128: width of one block-diagonal group

    # acts column offsets: [Q-diag | K-diag | V-diag | scale | bias]
    KD = HD
    VD = 2 * HD
    SC = 3 * HD
    BI = SC + hbs
    # params row offsets: [W stacked | b head-major | W_o | bo/gamma/beta]
    BR = HD                      # head-major projection biases
    WO = BR + hbs                # output-projection weight rows
    TL = WO + d_model            # tail: bo, gamma, beta rows

    # ---- head-major Q/K/V: block-diag activations x head-stacked weights.
    # The heads->sublanes relayout happened in the wrapper; here it is just
    # three single-pass MXU matmuls plus tiny bias adds, no in-kernel shuffles.
    qh = jnp.dot(acts_ref[:, 0:HD], p_ref[0:HD, 0:d_k],
                 preferred_element_type=f32) + p_ref[BR:BR + hbs, 0:d_k]
    kh = jnp.dot(acts_ref[:, KD:KD + HD], p_ref[0:HD, d_k:2 * d_k],
                 preferred_element_type=f32) + p_ref[BR:BR + hbs, d_k:2 * d_k]
    vh = jnp.dot(acts_ref[:, VD:VD + HD], p_ref[0:HD, 2 * d_k:2 * d_k + d_v],
                 preferred_element_type=f32) + p_ref[BR:BR + hbs, 2 * d_k:2 * d_k + d_v]

    # ---- all (batch, head) score blocks in one matmul; masking/scaling is one
    # fused multiply-add with precomputed arrays (exact masked_fill semantics:
    # scale=0 then add -1e9 replaces the score; off-block entries get -1e30).
    scores = jax.lax.dot_general(qh, kh, (((1,), (1,)), ((), ())),
                                 preferred_element_type=f32)          # (64, 64)
    scores = scores * acts_ref[:, SC:SC + hbs] + acts_ref[:, BI:BI + hbs]

    # ---- softmax with deferred normalization.
    m = jnp.max(scores, axis=-1, keepdims=True)
    e = jnp.exp(scores - m)
    denom = jnp.sum(e, axis=-1, keepdims=True)
    inv = pl.reciprocal(denom, approx=True)
    inv = inv * (2.0 - denom * inv)          # one Newton step on the (64,1) tile

    # Context for all (batch, head) pairs in one matmul, then normalize the
    # narrow (64, d_v) tile instead of the (64, 64) attention matrix.
    ctx = jnp.dot(e, vh, preferred_element_type=f32) * inv            # (64, d_v)

    # ---- per-head accumulating output projection (no ctx re-layout/concat).
    # Residual = original Q rows, available as head-0 block of the Q-diagonal.
    out = acts_ref[0:bs, 0:d_model] + p_ref[TL:TL + 1, :]             # resid + bo
    for h in range(n_heads):
        out = out + jnp.dot(ctx[h * bs:(h + 1) * bs, :],
                            p_ref[WO + h * d_v:WO + (h + 1) * d_v, :],
                            preferred_element_type=f32)

    # ---- LayerNorm.
    mean = jnp.mean(out, axis=-1, keepdims=True)
    var = jnp.mean((out - mean) ** 2, axis=-1, keepdims=True)
    normed = (out - mean) * jax.lax.rsqrt(var + LN_EPS)
    out_ref[...] = (normed * p_ref[TL + 1:TL + 2, :]
                    + p_ref[TL + 2:TL + 3, :]).astype(out_ref.dtype)


def multi_head_attention(Q, K, V, attn_mask, params,
                         *, d_k=D_K, d_v=D_V, n_heads=N_HEADS):
    """Q, K, V: (B, S, d_model); attn_mask: (B, S, S) float32 (1.0 = masked)."""
    B, S, d_model = Q.shape
    assert n_heads * d_v == d_model, "packing assumes n_heads*d_v == d_model"
    assert 2 * d_k + d_v <= d_model, "param slab lane width assumes 2*d_k+d_v <= d_model"
    bs = B * S
    hbs = n_heads * bs
    HD = n_heads * d_model
    f32 = jnp.float32

    wq, bq, wk, bk, wv, bv, wo, bo, gamma, beta = params

    # ---- wrapper-side packing (layout plumbing only; all free XLA work). ----
    eye = jnp.eye(n_heads, dtype=f32)

    def blockdiag(x):               # (B,S,d_model) -> (hbs, HD) head-block-diag
        return jnp.kron(eye, x.reshape(bs, d_model).astype(f32))

    def stack_w(w, dk):             # (d_model, H*dk) -> (H*d_model, dk)
        return (w.astype(f32).reshape(d_model, n_heads, dk)
                .transpose(1, 0, 2).reshape(HD, dk))

    def stack_b(b, dk):             # (H*dk,) -> (hbs, dk) head-major rows
        return jnp.broadcast_to(b.astype(f32).reshape(n_heads, 1, dk),
                                (n_heads, bs, dk)).reshape(hbs, dk)

    # Mask/scale hoisted out of the kernel: multiplicative scale + additive bias.
    idx = jnp.arange(hbs) // S                      # (batch, head) block id
    same_block = idx[:, None] == idx[None, :]
    mask_hm = jnp.broadcast_to(
        (attn_mask > 0.5)[None, :, :, None, None, :],
        (n_heads, B, S, n_heads, B, S)).reshape(hbs, hbs)
    scale_m = jnp.where(same_block & ~mask_hm,
                        jnp.float32(1.0 / math.sqrt(d_k)), 0.0).astype(f32)
    bias_m = jnp.where(same_block,
                       jnp.where(mask_hm, jnp.float32(-1e9), 0.0),
                       jnp.float32(-1e30)).astype(f32)

    # Runtime activation slab: one DMA.  (64, 3*128 + 64 + 64) = (64, 512).
    acts = jnp.concatenate(
        [blockdiag(Q), blockdiag(K), blockdiag(V), scale_m, bias_m], axis=1)

    # Parameter slab: one DMA.  (128 + 64 + 32 + 3 + pad, 32) = (232, 32).
    w_all = jnp.concatenate([stack_w(wq, d_k), stack_w(wk, d_k),
                             stack_w(wv, d_v)], axis=1)           # (128, 24)
    b_all = jnp.concatenate([stack_b(bq, d_k), stack_b(bk, d_k),
                             stack_b(bv, d_v)], axis=1)           # (64, 24)
    pad_lanes = d_model - w_all.shape[1]
    pad_rows = (-(d_model + 3)) % 8
    tail = jnp.concatenate(
        [wo.astype(f32), bo.astype(f32)[None, :], gamma.astype(f32)[None, :],
         beta.astype(f32)[None, :], jnp.zeros((pad_rows, d_model), f32)], axis=0)
    params_slab = jnp.concatenate(
        [jnp.pad(w_all, ((0, 0), (0, pad_lanes))),
         jnp.pad(b_all, ((0, 0), (0, pad_lanes))),
         tail], axis=0)                                            # (232, 32)

    kernel = functools.partial(_mha_kernel, batch=B, seq=S, n_heads=n_heads,
                               d_k=d_k, d_v=d_v, d_model=d_model)

    vmem = pl.BlockSpec(memory_space=pltpu.MemorySpace.VMEM)
    out = pl.pallas_call(
        kernel,
        out_shape=jax.ShapeDtypeStruct((bs, d_model), jnp.float32),
        in_specs=[vmem, vmem],
        out_specs=vmem,
    )(acts, params_slab)

    return out.reshape(B, S, d_model).astype(Q.dtype)


def _reference(Q, K, V, attn_mask, params, *, d_k=D_K, d_v=D_V, n_heads=N_HEADS):
    """Plain-JAX reference mirroring the PyTorch forward, for correctness check."""
    wq, bq, wk, bk, wv, bv, wo, bo, gamma, beta = params
    B, S, d_model = Q.shape
    qs = (Q @ wq + bq).reshape(B, S, n_heads, d_k).transpose(0, 2, 1, 3)
    ks = (K @ wk + bk).reshape(B, S, n_heads, d_k).transpose(0, 2, 1, 3)
    vs = (V @ wv + bv).reshape(B, S, n_heads, d_v).transpose(0, 2, 1, 3)
    scores = jnp.einsum('bhqd,bhkd->bhqk', qs, ks) / math.sqrt(d_k)
    mask = attn_mask[:, None, :, :] > 0.5
    scores = jnp.where(mask, -1e9, scores)
    attn = jax.nn.softmax(scores, axis=-1)
    ctx = jnp.einsum('bhqk,bhkd->bhqd', attn, vs)
    ctx = ctx.transpose(0, 2, 1, 3).reshape(B, S, n_heads * d_v)
    out = ctx @ wo + bo + Q
    mean = out.mean(-1, keepdims=True)
    var = ((out - mean) ** 2).mean(-1, keepdims=True)
    return (out - mean) * jax.lax.rsqrt(var + LN_EPS) * gamma + beta


def _init_params(key):
    """Deterministic synthetic parameters (in-features, out-features layout)."""
    ks = jax.random.split(key, 10)

    def lin(k, fan_in, fan_out):
        bound = 1.0 / math.sqrt(fan_in)
        kw, kb = jax.random.split(k)
        w = jax.random.uniform(kw, (fan_in, fan_out), jnp.float32, -bound, bound)
        b = jax.random.uniform(kb, (fan_out,), jnp.float32, -bound, bound)
        return w, b

    wq, bq = lin(ks[0], D_MODEL, N_HEADS * D_K)
    wk, bk = lin(ks[1], D_MODEL, N_HEADS * D_K)
    wv, bv = lin(ks[2], D_MODEL, N_HEADS * D_V)
    wo, bo = lin(ks[3], N_HEADS * D_V, D_MODEL)
    gamma = jnp.ones((D_MODEL,), jnp.float32)
    beta = jnp.zeros((D_MODEL,), jnp.float32)
    return (wq, bq, wk, bk, wv, bv, wo, bo, gamma, beta)


if __name__ == "__main__":
    key = jax.random.PRNGKey(0)
    k_q, k_k, k_v, k_m, k_p = jax.random.split(key, 5)

    Q = jax.random.normal(k_q, (BATCH, SEQ, D_MODEL), jnp.float32)
    K = jax.random.normal(k_k, (BATCH, SEQ, D_MODEL), jnp.float32)
    V = jax.random.normal(k_v, (BATCH, SEQ, D_MODEL), jnp.float32)
    # Boolean padding-style mask, passed as float32 (1.0 = masked).
    attn_mask = (jax.random.uniform(k_m, (BATCH, SEQ, SEQ)) < 0.2).astype(jnp.float32)

    params = _init_params(k_p)

    mha = jax.jit(multi_head_attention)
    out = mha(Q, K, V, attn_mask, params)
    out = jax.block_until_ready(out)

    ref = _reference(Q, K, V, attn_mask, params)
    assert out.shape == (BATCH, SEQ, D_MODEL)
    # 1e-3 tolerance: EUP approx-reciprocal (+Newton) and the fused/big-matmul
    # accumulation order differ slightly from the plain-JAX reference.
    assert jnp.allclose(out, ref, atol=1e-3, rtol=1e-3), "mismatch vs JAX reference"

    print("KERNEL_OK")
</pallas_src>

<mosaic_0001>
module attributes {stable_mosaic.version = 11 : i64} {
  func.func @_mha_kernel(%arg0: memref<64x512xf32, #tpu.memory_space<vmem>>, %arg1: memref<232x32xf32, #tpu.memory_space<vmem>>, %arg2: memref<16x32xf32, #tpu.memory_space<vmem>>) attributes {dimension_semantics = [], scalar_prefetch = 0 : i64, scratch_operands = 0 : i64, tpu.core_type = #tpu.core_type<tc>} {
    %c0 = arith.constant 0 : index
    %c0_0 = arith.constant 0 : index
    %0 = vector.load %arg0[%c0, %c0_0] : memref<64x512xf32, #tpu.memory_space<vmem>>, vector<64x128xf32>
    %c0_1 = arith.constant 0 : index
    %c0_2 = arith.constant 0 : index
    %1 = vector.load %arg1[%c0_1, %c0_2] : memref<232x32xf32, #tpu.memory_space<vmem>>, vector<128x8xf32>
    %cst = arith.constant dense<0.000000e+00> : vector<64x8xf32>
    %2 = tpu.matmul %0, %1, %cst {dimension_numbers = #tpu.dot_dimension_numbers<[1], [0], [0], [1], [0, 0, 1, 1], [], []>} : vector<64x128xf32>, vector<128x8xf32>, vector<64x8xf32> -> vector<64x8xf32>
    %c128 = arith.constant 128 : index
    %c0_3 = arith.constant 0 : index
    %3 = vector.load %arg1[%c128, %c0_3] : memref<232x32xf32, #tpu.memory_space<vmem>>, vector<64x8xf32>
    %4 = arith.addf %2, %3 : vector<64x8xf32>
    %c0_4 = arith.constant 0 : index
    %c128_5 = arith.constant 128 : index
    %5 = vector.load %arg0[%c0_4, %c128_5] : memref<64x512xf32, #tpu.memory_space<vmem>>, vector<64x128xf32>
    %c0_6 = arith.constant 0 : index
    %c8 = arith.constant 8 : index
    %6 = vector.load %arg1[%c0_6, %c8] : memref<232x32xf32, #tpu.memory_space<vmem>>, vector<128x8xf32>
    %cst_7 = arith.constant dense<0.000000e+00> : vector<64x8xf32>
    %7 = tpu.matmul %5, %6, %cst_7 {dimension_numbers = #tpu.dot_dimension_numbers<[1], [0], [0], [1], [0, 0, 1, 1], [], []>} : vector<64x128xf32>, vector<128x8xf32>, vector<64x8xf32> -> vector<64x8xf32>
    %c128_8 = arith.constant 128 : index
    %c8_9 = arith.constant 8 : index
    %8 = vector.load %arg1[%c128_8, %c8_9] : memref<232x32xf32, #tpu.memory_space<vmem>>, vector<64x8xf32>
    %9 = arith.addf %7, %8 : vector<64x8xf32>
    %c0_10 = arith.constant 0 : index
    %c256 = arith.constant 256 : index
    %10 = vector.load %arg0[%c0_10, %c256] : memref<64x512xf32, #tpu.memory_space<vmem>>, vector<64x128xf32>
    %c0_11 = arith.constant 0 : index
    %c16 = arith.constant 16 : index
    %11 = vector.load %arg1[%c0_11, %c16] : memref<232x32xf32, #tpu.memory_space<vmem>>, vector<128x8xf32>
    %cst_12 = arith.constant dense<0.000000e+00> : vector<64x8xf32>
    %12 = tpu.matmul %10, %11, %cst_12 {dimension_numbers = #tpu.dot_dimension_numbers<[1], [0], [0], [1], [0, 0, 1, 1], [], []>} : vector<64x128xf32>, vector<128x8xf32>, vector<64x8xf32> -> vector<64x8xf32>
    %c128_13 = arith.constant 128 : index
    %c16_14 = arith.constant 16 : index
    %13 = vector.load %arg1[%c128_13, %c16_14] : memref<232x32xf32, #tpu.memory_space<vmem>>, vector<64x8xf32>
    %14 = arith.addf %12, %13 : vector<64x8xf32>
    %cst_15 = arith.constant dense<0.000000e+00> : vector<64x64xf32>
    %15 = tpu.matmul %4, %9, %cst_15 {dimension_numbers = #tpu.dot_dimension_numbers<[1], [1], [0], [0], [0, 0, 1, 0], [], []>} : vector<64x8xf32>, vector<64x8xf32>, vector<64x64xf32> -> vector<64x64xf32>
    %c0_16 = arith.constant 0 : index
    %c384 = arith.constant 384 : index
    %16 = vector.load %arg0[%c0_16, %c384] : memref<64x512xf32, #tpu.memory_space<vmem>>, vector<64x64xf32>
    %17 = arith.mulf %15, %16 : vector<64x64xf32>
    %c0_17 = arith.constant 0 : index
    %c448 = arith.constant 448 : index
    %18 = vector.load %arg0[%c0_17, %c448] : memref<64x512xf32, #tpu.memory_space<vmem>>, vector<64x64xf32>
    %19 = arith.addf %17, %18 : vector<64x64xf32>
    %cst_18 = arith.constant dense<0xFF800000> : vector<64xf32>
    %20 = vector.multi_reduction <maximumf>, %19, %cst_18 [1] : vector<64x64xf32> to vector<64xf32>
    %21 = vector.shape_cast %20 : vector<64xf32> to vector<64x1xf32>
    %22 = vector.broadcast %21 : vector<64x1xf32> to vector<64x64xf32>
    %23 = arith.subf %19, %22 : vector<64x64xf32>
    %24 = math.exp %23 : vector<64x64xf32>
    %cst_19 = arith.constant dense<0.000000e+00> : vector<64xf32>
    %25 = vector.multi_reduction <add>, %24, %cst_19 [1] : vector<64x64xf32> to vector<64xf32>
    %26 = vector.shape_cast %25 : vector<64xf32> to vector<64x1xf32>
    %27 = tpu.reciprocal %26 {approx = true} : vector<64x1xf32> -> vector<64x1xf32>
    %28 = arith.mulf %26, %27 : vector<64x1xf32>
    %cst_20 = arith.constant 2.000000e+00 : f32
    %29 = vector.broadcast %cst_20 : f32 to vector<64x1xf32>
    %30 = arith.subf %29, %28 : vector<64x1xf32>
    %31 = arith.mulf %27, %30 : vector<64x1xf32>
    %cst_21 = arith.constant dense<0.000000e+00> : vector<64x8xf32>
    %32 = tpu.matmul %24, %14, %cst_21 {dimension_numbers = #tpu.dot_dimension_numbers<[1], [0], [0], [1], [0, 0, 1, 1], [], []>} : vector<64x64xf32>, vector<64x8xf32>, vector<64x8xf32> -> vector<64x8xf32>
    %33 = vector.broadcast %31 : vector<64x1xf32> to vector<64x8xf32>
    %34 = arith.mulf %32, %33 : vector<64x8xf32>
    %c0_22 = arith.constant 0 : index
    %c0_23 = arith.constant 0 : index
    %35 = vector.load %arg0[%c0_22, %c0_23] : memref<64x512xf32, #tpu.memory_space<vmem>>, vector<16x32xf32>
    %c224 = arith.constant 224 : index
    %c0_24 = arith.constant 0 : index
    %36 = vector.load %arg1[%c224, %c0_24] : memref<232x32xf32, #tpu.memory_space<vmem>>, vector<1x32xf32>
    %37 = vector.broadcast %36 : vector<1x32xf32> to vector<16x32xf32>
    %38 = arith.addf %35, %37 : vector<16x32xf32>
    %39 = vector.extract_strided_slice %34 {offsets = [0, 0], sizes = [16, 8], strides = [1, 1]} : vector<64x8xf32> to vector<16x8xf32>
    %c192 = arith.constant 192 : index
    %c0_25 = arith.constant 0 : index
    %40 = vector.load %arg1[%c192, %c0_25] : memref<232x32xf32, #tpu.memory_space<vmem>>, vector<8x32xf32>
    %cst_26 = arith.constant dense<0.000000e+00> : vector<16x32xf32>
    %41 = tpu.matmul %39, %40, %cst_26 {dimension_numbers = #tpu.dot_dimension_numbers<[1], [0], [0], [1], [0, 0, 1, 1], [], []>} : vector<16x8xf32>, vector<8x32xf32>, vector<16x32xf32> -> vector<16x32xf32>
    %42 = arith.addf %38, %41 : vector<16x32xf32>
    %43 = vector.extract_strided_slice %34 {offsets = [16, 0], sizes = [16, 8], strides = [1, 1]} : vector<64x8xf32> to vector<16x8xf32>
    %c200 = arith.constant 200 : index
    %c0_27 = arith.constant 0 : index
    %44 = vector.load %arg1[%c200, %c0_27] : memref<232x32xf32, #tpu.memory_space<vmem>>, vector<8x32xf32>
    %cst_28 = arith.constant dense<0.000000e+00> : vector<16x32xf32>
    %45 = tpu.matmul %43, %44, %cst_28 {dimension_numbers = #tpu.dot_dimension_numbers<[1], [0], [0], [1], [0, 0, 1, 1], [], []>} : vector<16x8xf32>, vector<8x32xf32>, vector<16x32xf32> -> vector<16x32xf32>
    %46 = arith.addf %42, %45 : vector<16x32xf32>
    %47 = vector.extract_strided_slice %34 {offsets = [32, 0], sizes = [16, 8], strides = [1, 1]} : vector<64x8xf32> to vector<16x8xf32>
    %c208 = arith.constant 208 : index
    %c0_29 = arith.constant 0 : index
    %48 = vector.load %arg1[%c208, %c0_29] : memref<232x32xf32, #tpu.memory_space<vmem>>, vector<8x32xf32>
    %cst_30 = arith.constant dense<0.000000e+00> : vector<16x32xf32>
    %49 = tpu.matmul %47, %48, %cst_30 {dimension_numbers = #tpu.dot_dimension_numbers<[1], [0], [0], [1], [0, 0, 1, 1], [], []>} : vector<16x8xf32>, vector<8x32xf32>, vector<16x32xf32> -> vector<16x32xf32>
    %50 = arith.addf %46, %49 : vector<16x32xf32>
    %51 = vector.extract_strided_slice %34 {offsets = [48, 0], sizes = [16, 8], strides = [1, 1]} : vector<64x8xf32> to vector<16x8xf32>
    %c216 = arith.constant 216 : index
    %c0_31 = arith.constant 0 : index
    %52 = vector.load %arg1[%c216, %c0_31] : memref<232x32xf32, #tpu.memory_space<vmem>>, vector<8x32xf32>
    %cst_32 = arith.constant dense<0.000000e+00> : vector<16x32xf32>
    %53 = tpu.matmul %51, %52, %cst_32 {dimension_numbers = #tpu.dot_dimension_numbers<[1], [0], [0], [1], [0, 0, 1, 1], [], []>} : vector<16x8xf32>, vector<8x32xf32>, vector<16x32xf32> -> vector<16x32xf32>
    %54 = arith.addf %50, %53 : vector<16x32xf32>
    %cst_33 = arith.constant dense<0.000000e+00> : vector<16xf32>
    %55 = vector.multi_reduction <add>, %54, %cst_33 [1] : vector<16x32xf32> to vector<16xf32>
    %56 = vector.shape_cast %55 : vector<16xf32> to vector<16x1xf32>
    %cst_34 = arith.constant 3.200000e+01 : f32
    %57 = vector.broadcast %cst_34 : f32 to vector<16x1xf32>
    %58 = arith.divf %56, %57 : vector<16x1xf32>
    %59 = vector.broadcast %58 : vector<16x1xf32> to vector<16x32xf32>
    %60 = arith.subf %54, %59 : vector<16x32xf32>
    %61 = arith.mulf %60, %60 : vector<16x32xf32>
    %cst_35 = arith.constant dense<0.000000e+00> : vector<16xf32>
    %62 = vector.multi_reduction <add>, %61, %cst_35 [1] : vector<16x32xf32> to vector<16xf32>
    %63 = vector.shape_cast %62 : vector<16xf32> to vector<16x1xf32>
    %cst_36 = arith.constant 3.200000e+01 : f32
    %64 = vector.broadcast %cst_36 : f32 to vector<16x1xf32>
    %65 = arith.divf %63, %64 : vector<16x1xf32>
    %66 = vector.broadcast %58 : vector<16x1xf32> to vector<16x32xf32>
    %67 = arith.subf %54, %66 : vector<16x32xf32>
    %cst_37 = arith.constant 9.99999974E-6 : f32
    %68 = vector.broadcast %cst_37 : f32 to vector<16x1xf32>
    %69 = arith.addf %65, %68 : vector<16x1xf32>
    %70 = math.rsqrt %69 : vector<16x1xf32>
    %71 = vector.broadcast %70 : vector<16x1xf32> to vector<16x32xf32>
    %72 = arith.mulf %67, %71 : vector<16x32xf32>
    %c225 = arith.constant 225 : index
    %c0_38 = arith.constant 0 : index
    %73 = vector.load %arg1[%c225, %c0_38] : memref<232x32xf32, #tpu.memory_space<vmem>>, vector<1x32xf32>
    %74 = vector.broadcast %73 : vector<1x32xf32> to vector<16x32xf32>
    %75 = arith.mulf %72, %74 : vector<16x32xf32>
    %c226 = arith.constant 226 : index
    %c0_39 = arith.constant 0 : index
    %76 = vector.load %arg1[%c226, %c0_39] : memref<232x32xf32, #tpu.memory_space<vmem>>, vector<1x32xf32>
    %77 = vector.broadcast %76 : vector<1x32xf32> to vector<16x32xf32>
    %78 = arith.addf %75, %77 : vector<16x32xf32>
    %c0_40 = arith.constant 0 : index
    %c0_41 = arith.constant 0 : index
    %79 = vector.load %arg2[%c0_40, %c0_41] : memref<16x32xf32, #tpu.memory_space<vmem>>, vector<16x32xf32>
    tpu.vector_store %arg2[%c0_40, %c0_41], %78 {strides = array<i32>} : memref<16x32xf32, #tpu.memory_space<vmem>>, vector<16x32xf32>,
    return
  }
}

</mosaic_0001>

<llo_original>
// kernel: multi_head_attention.1
$region0: #{multi_head_attention.1}
  #allocation0 [shape = 'u32[]', space=smem, size = 0x4, offset = 0x4, fixed_abs, tag = 'smem constant byte address 0x4 - core index']
  #allocation1 [shape = 'u32[144,128]{1,0:T(1,128)}', space=vmem, size = 0x12000, scoped, tag = 'internal scratch']
  %s0 = inlined_call_operand.vmem [shape: f32[64,512], index: 0, kind: input, shape index: {}]
  %s1 = inlined_call_operand.vmem [shape: f32[232,32], index: 1, kind: input, shape index: {}]
  %s2 = inlined_call_operand.hbm [shape: f32[16,32], index: 2, kind: output, shape index: {}]
  %s3 = sld [smem:[#allocation0]]
  $region18: #{multi_head_attention.1} parent=0
    _
  %s5 = ssub.s32 1, %s3
  %s6 = scalar_select 0, %s5, %s3
  $region1: #{multi_head_attention.1} parent=0
    #allocation2 [shape = 'u8[8192]{0}', space=vmem, size = 0x2000, scoped, tag = 'output window, operand 0, single buffered']
    #allocation3 [shape = 's32[1]{0}', space=sflag, size = 0x4, scoped, tag = 'scoped memory for multi_head_attention.1']
    %7 = vsyncpa [#allocation3], 0
    // Predicated region
    $region2: #{multi_head_attention.1} parent=1 // pred_check
      _
    $region3: #{multi_head_attention.1} parent=1 // pred_check_branch
      %9 = sbr.rel (0) target = $region5
    $region4: #{multi_head_attention.1} parent=1 // pred_region
      _
    $region5: #{multi_head_attention.1} parent=1 // pred_fallthru
      _
    // Predicated region
    $region6: #{multi_head_attention.1} parent=1 // pred_check
      _
    $region7: #{multi_head_attention.1} parent=1 // pred_check_branch
      %11 = sbr.rel (0) target = $region9
    $region8: #{multi_head_attention.1} parent=1 // pred_region
      _
    $region9: #{multi_head_attention.1} parent=1 // pred_fallthru
      _
    %v12 = vld [vmem:[%s0] sm:$0xff]
    %v13 = vld [vmem:[%s0 + $0x20] sm:$0xff]
    %v14 = vld [vmem:[%s0 + $0x40] sm:$0xff]
    %v15 = vld [vmem:[%s0 + $0x60] sm:$0xff]
    %v16 = vld [vmem:[%s0 + $0x80] sm:$0xff]
    %v17 = vld [vmem:[%s0 + $0xa0] sm:$0xff]
    %v18 = vld [vmem:[%s0 + $0xc0] sm:$0xff]
    %v19 = vld [vmem:[%s0 + $0xe0] sm:$0xff]
    %v20 = vld [vmem:[%s1] sm:$0xff]
    %v21 = vld [vmem:[%s1 + $0x8] sm:$0xff]
    %v22 = vld [vmem:[%s1 + $0x10] sm:$0xff]
    %v23 = vld [vmem:[%s1 + $0x18] sm:$0xff]
    %v24 = vld [vmem:[%s1 + $0x20] sm:$0xff]
    %v25 = vld [vmem:[%s1 + $0x28] sm:$0xff]
    %v26 = vld [vmem:[%s1 + $0x30] sm:$0xff]
    %v27 = vld [vmem:[%s1 + $0x38] sm:$0xff]
    %v28 = vld [vmem:[%s1 + $0x40] sm:$0xff]
    %v29 = vld [vmem:[%s1 + $0x48] sm:$0xff]
    %v30 = vld [vmem:[%s1 + $0x50] sm:$0xff]
    %v31 = vld [vmem:[%s1 + $0x58] sm:$0xff]
    %v32 = vld [vmem:[%s1 + $0x60] sm:$0xff]
    %v33 = vld [vmem:[%s1 + $0x68] sm:$0xff]
    %v34 = vld [vmem:[%s1 + $0x70] sm:$0xff]
    %v35 = vld [vmem:[%s1 + $0x78] sm:$0xff]
    %v36 = vld [vmem:[%s1 + $0x80] sm:$0xff]
    %v37 = vld [vmem:[%s1 + $0x88] sm:$0xff]
    %v38 = vld [vmem:[%s1 + $0x90] sm:$0xff]
    %v39 = vld [vmem:[%s1 + $0x98] sm:$0xff]
    %v40 = vld [vmem:[%s1 + $0xa0] sm:$0xff]
    %v41 = vld [vmem:[%s1 + $0xa8] sm:$0xff]
    %v42 = vld [vmem:[%s1 + $0xb0] sm:$0xff]
    %v43 = vld [vmem:[%s1 + $0xb8] sm:$0xff]
    %44 = vmatprep.subr.mxu0 0.0
    %45 = vmatpush1.msra.mxu0 %v20
    %46 = vmatprep.subr.mxu0 0.0
    %47 = vmatpush1.msra.mxu0 %v21
    %48 = vmatprep.subr.mxu0 0.0
    %49 = vmatpush1.msra.mxu0 %v22
    %50 = vmatprep.subr.mxu0 0.0
    %51 = vmatpush1.msra.mxu0 %v23
    %52 = vmatprep.subr.mxu0 0.0
    %53 = vmatpush1.msra.mxu0 %v24
    %54 = vmatprep.subr.mxu0 0.0
    %55 = vmatpush1.msra.mxu0 %v25
    %56 = vmatprep.subr.mxu0 0.0
    %57 = vmatpush1.msra.mxu0 %v26
    %58 = vmatprep.subr.mxu0 0.0
    %59 = vmatpush1.msra.mxu0 %v27
    %60 = vmatprep.subr.mxu0 0.0
    %61 = vmatpush1.msra.mxu0 %v28
    %62 = vmatprep.subr.mxu0 0.0
    %63 = vmatpush1.msra.mxu0 %v29
    %64 = vmatprep.subr.mxu0 0.0
    %65 = vmatpush1.msra.mxu0 %v30
    %66 = vmatprep.subr.mxu0 0.0
    %67 = vmatpush1.msra.mxu0 %v31
    %68 = vmatprep.subr.mxu0 0.0
    %69 = vmatpush1.msra.mxu0 %v32
    %70 = vmatprep.subr.mxu0 0.0
    %71 = vmatpush1.msra.mxu0 %v33
    %72 = vmatprep.subr.mxu0 0.0
    %73 = vmatpush1.msra.mxu0 %v34
    %74 = vmatprep.subr.mxu0 0.0
    %75 = vmatpush1.msra.mxu0 %v35
    %76 = vmatprep.subr.mxu0 0.0
    %77 = vmatpush1.msra.mxu0 0.0
    %78 = vmatprep.subr.mxu0 0.0
    %79 = vmatpush1.msra.mxu0 0.0
    %80 = vmatprep.subr.mxu0 0.0
    %81 = vmatpush1.msra.mxu0 0.0
    %82 = vmatprep.subr.mxu0 0.0
    %83 = vmatpush1.msra.mxu0 0.0
    %84 = vmatprep.subr.mxu0 0.0
    %85 = vmatpush1.msra.mxu0 0.0
    %86 = vmatprep.subr.mxu0 0.0
    %87 = vmatpush1.msra.mxu0 0.0
    %88 = vmatprep.subr.mxu0 0.0
    %89 = vmatpush1.msra.mxu0 0.0
    %90 = vmatprep.subr.mxu0 0.0
    %91 = vmatpush1.msra.mxu0 0.0
    %92 = vmatprep.subr.mxu0 0.0
    %93 = vmatpush1.msra.mxu0 0.0
    %94 = vmatprep.subr.mxu0 0.0
    %95 = vmatpush1.msra.mxu0 0.0
    %96 = vmatprep.subr.mxu0 0.0
    %97 = vmatpush1.msra.mxu0 0.0
    %98 = vmatprep.subr.mxu0 0.0
    %99 = vmatpush1.msra.mxu0 0.0
    %100 = vmatprep.subr.mxu0 0.0
    %101 = vmatpush1.msra.mxu0 0.0
    %102 = vmatprep.subr.mxu0 0.0
    %103 = vmatpush1.msra.mxu0 0.0
    %104 = vmatprep.subr.mxu0 0.0
    %105 = vmatpush1.msra.mxu0 0.0
    %106 = vmatprep.subr.mxu0 0.0
    %107 = vmatpush1.msra.mxu0 0.0
    %108 = vmatprep.mubr.f32.mxu0 0.0
    %109 = vmatmul.mubr.f32.gmra.mrb[0].mxu0 %v12
    %v110 = vpop.f32.mrb[0].mxu0
    %v111 = vadd.f32 %v36, %v110
    %v112 = vpop.f32.mrb[0].mxu0
    %113 = vmatprep.mubr.f32.mxu0 0.0
    %114 = vmatmul.mubr.f32.gmra.mrb[0].mxu0 %v13
    %v115 = vpop.f32.mrb[0].mxu0
    %v116 = vadd.f32 %v37, %v115
    %v117 = vpop.f32.mrb[0].mxu0
    %118 = vmatprep.mubr.f32.mxu0 0.0
    %119 = vmatmul.mubr.f32.gmra.mrb[0].mxu0 %v14
    %v120 = vpop.f32.mrb[0].mxu0
    %v121 = vadd.f32 %v38, %v120
    %v122 = vpop.f32.mrb[0].mxu0
    %123 = vmatprep.mubr.f32.mxu0 0.0
    %124 = vmatmul.mubr.f32.gmra.mrb[0].mxu0 %v15
    %v125 = vpop.f32.mrb[0].mxu0
    %v126 = vadd.f32 %v39, %v125
    %v127 = vpop.f32.mrb[0].mxu0
    %128 = vmatprep.mubr.f32.mxu0 0.0
    %129 = vmatmul.mubr.f32.gmra.mrb[0].mxu0 %v16
    %v130 = vpop.f32.mrb[0].mxu0
    %v131 = vadd.f32 %v40, %v130
    %v132 = vpop.f32.mrb[0].mxu0
    %133 = vmatprep.mubr.f32.mxu0 0.0
    %134 = vmatmul.mubr.f32.gmra.mrb[0].mxu0 %v17
    %v135 = vpop.f32.mrb[0].mxu0
    %v136 = vadd.f32 %v41, %v135
    %v137 = vpop.f32.mrb[0].mxu0
    %138 = vmatprep.mubr.f32.mxu0 0.0
    %139 = vmatmul.mubr.f32.gmra.mrb[0].mxu0 %v18
    %v140 = vpop.f32.mrb[0].mxu0
    %v141 = vadd.f32 %v42, %v140
    %v142 = vpop.f32.mrb[0].mxu0
    %143 = vmatprep.mubr.f32.mxu0 0.0
    %144 = vmatmul.mubr.f32.gmra.mrb[0].mxu0 %v19
    %v145 = vpop.f32.mrb[0].mxu0
    %v146 = vadd.f32 %v43, %v145
    %v147 = vpop.f32.mrb[0].mxu0
    %148 = vdwg.mxu0
    %v149 = vld [vmem:[%s0 + $0x8] sm:$0xff]
    %v150 = vld [vmem:[%s0 + $0x28] sm:$0xff]
    %v151 = vld [vmem:[%s0 + $0x48] sm:$0xff]
    %v152 = vld [vmem:[%s0 + $0x68] sm:$0xff]
    %v153 = vld [vmem:[%s0 + $0x88] sm:$0xff]
    %v154 = vld [vmem:[%s0 + $0xa8] sm:$0xff]
    %v155 = vld [vmem:[%s0 + $0xc8] sm:$0xff]
    %v156 = vld [vmem:[%s0 + $0xe8] sm:$0xff]
    %173 = vrot.lane.b32.xlu0 %v20, 120
    %v174 = vpop.permute.xlu0 %173
    %175 = vrot.lane.b32.xlu0 %v21, 120
    %v176 = vpop.permute.xlu0 %175
    %177 = vrot.lane.b32.xlu0 %v22, 120
    %v178 = vpop.permute.xlu0 %177
    %179 = vrot.lane.b32.xlu0 %v23, 120
    %v180 = vpop.permute.xlu0 %179
    %181 = vrot.lane.b32.xlu0 %v24, 120
    %v182 = vpop.permute.xlu0 %181
    %183 = vrot.lane.b32.xlu0 %v25, 120
    %v184 = vpop.permute.xlu0 %183
    %185 = vrot.lane.b32.xlu0 %v26, 120
    %v186 = vpop.permute.xlu0 %185
    %187 = vrot.lane.b32.xlu0 %v27, 120
    %v188 = vpop.permute.xlu0 %187
    %189 = vrot.lane.b32.xlu0 %v28, 120
    %v190 = vpop.permute.xlu0 %189
    %191 = vrot.lane.b32.xlu0 %v29, 120
    %v192 = vpop.permute.xlu0 %191
    %193 = vrot.lane.b32.xlu0 %v30, 120
    %v194 = vpop.permute.xlu0 %193
    %195 = vrot.lane.b32.xlu0 %v31, 120
    %v196 = vpop.permute.xlu0 %195
    %197 = vrot.lane.b32.xlu0 %v32, 120
    %v198 = vpop.permute.xlu0 %197
    %199 = vrot.lane.b32.xlu0 %v33, 120
    %v200 = vpop.permute.xlu0 %199
    %201 = vrot.lane.b32.xlu0 %v34, 120
    %v202 = vpop.permute.xlu0 %201
    %203 = vrot.lane.b32.xlu0 %v35, 120
    %v204 = vpop.permute.xlu0 %203
    %229 = vrot.lane.b32.xlu0 %v36, 120
    %v230 = vpop.permute.xlu0 %229
    %231 = vrot.lane.b32.xlu0 %v37, 120
    %v232 = vpop.permute.xlu0 %231
    %233 = vrot.lane.b32.xlu0 %v38, 120
    %v234 = vpop.permute.xlu0 %233
    %235 = vrot.lane.b32.xlu0 %v39, 120
    %v236 = vpop.permute.xlu0 %235
    %237 = vrot.lane.b32.xlu0 %v40, 120
    %v238 = vpop.permute.xlu0 %237
    %239 = vrot.lane.b32.xlu0 %v41, 120
    %v240 = vpop.permute.xlu0 %239
    %241 = vrot.lane.b32.xlu0 %v42, 120
    %v242 = vpop.permute.xlu0 %241
    %243 = vrot.lane.b32.xlu0 %v43, 120
    %v244 = vpop.permute.xlu0 %243
    %253 = vmatprep.subr.mxu0 0.0
    %254 = vmatpush1.msra.mxu0 %v174
    %255 = vmatprep.subr.mxu0 0.0
    %256 = vmatpush1.msra.mxu0 %v176
    %257 = vmatprep.subr.mxu0 0.0
    %258 = vmatpush1.msra.mxu0 %v178
    %259 = vmatprep.subr.mxu0 0.0
    %260 = vmatpush1.msra.mxu0 %v180
    %261 = vmatprep.subr.mxu0 0.0
    %262 = vmatpush1.msra.mxu0 %v182
    %263 = vmatprep.subr.mxu0 0.0
    %264 = vmatpush1.msra.mxu0 %v184
    %265 = vmatprep.subr.mxu0 0.0
    %266 = vmatpush1.msra.mxu0 %v186
    %267 = vmatprep.subr.mxu0 0.0
    %268 = vmatpush1.msra.mxu0 %v188
    %269 = vmatprep.subr.mxu0 0.0
    %270 = vmatpush1.msra.mxu0 %v190
    %271 = vmatprep.subr.mxu0 0.0
    %272 = vmatpush1.msra.mxu0 %v192
    %273 = vmatprep.subr.mxu0 0.0
    %274 = vmatpush1.msra.mxu0 %v194
    %275 = vmatprep.subr.mxu0 0.0
    %276 = vmatpush1.msra.mxu0 %v196
    %277 = vmatprep.subr.mxu0 0.0
    %278 = vmatpush1.msra.mxu0 %v198
    %279 = vmatprep.subr.mxu0 0.0
    %280 = vmatpush1.msra.mxu0 %v200
    %281 = vmatprep.subr.mxu0 0.0
    %282 = vmatpush1.msra.mxu0 %v202
    %283 = vmatprep.subr.mxu0 0.0
    %284 = vmatpush1.msra.mxu0 %v204
    %285 = vmatprep.subr.mxu0 0.0
    %286 = vmatpush1.msra.mxu0 0.0
    %287 = vmatprep.subr.mxu0 0.0
    %288 = vmatpush1.msra.mxu0 0.0
    %289 = vmatprep.subr.mxu0 0.0
    %290 = vmatpush1.msra.mxu0 0.0
    %291 = vmatprep.subr.mxu0 0.0
    %292 = vmatpush1.msra.mxu0 0.0
    %293 = vmatprep.subr.mxu0 0.0
    %294 = vmatpush1.msra.mxu0 0.0
    %295 = vmatprep.subr.mxu0 0.0
    %296 = vmatpush1.msra.mxu0 0.0
    %297 = vmatprep.subr.mxu0 0.0
    %298 = vmatpush1.msra.mxu0 0.0
    %299 = vmatprep.subr.mxu0 0.0
    %300 = vmatpush1.msra.mxu0 0.0
    %301 = vmatprep.subr.mxu0 0.0
    %302 = vmatpush1.msra.mxu0 0.0
    %303 = vmatprep.subr.mxu0 0.0
    %304 = vmatpush1.msra.mxu0 0.0
    %305 = vmatprep.subr.mxu0 0.0
    %306 = vmatpush1.msra.mxu0 0.0
    %307 = vmatprep.subr.mxu0 0.0
    %308 = vmatpush1.msra.mxu0 0.0
    %309 = vmatprep.subr.mxu0 0.0
    %310 = vmatpush1.msra.mxu0 0.0
    %311 = vmatprep.subr.mxu0 0.0
    %312 = vmatpush1.msra.mxu0 0.0
    %313 = vmatprep.subr.mxu0 0.0
    %314 = vmatpush1.msra.mxu0 0.0
    %315 = vmatprep.subr.mxu0 0.0
    %316 = vmatpush1.msra.mxu0 0.0
    %317 = vmatprep.mubr.f32.mxu0 0.0
    %318 = vmatmul.mubr.f32.gmra.mrb[0].mxu0 %v149
    %v319 = vpop.f32.mrb[0].mxu0
    %v320 = vadd.f32 %v230, %v319
    %v321 = vpop.f32.mrb[0].mxu0
    %322 = vmatprep.mubr.f32.mxu0 0.0
    %323 = vmatmul.mubr.f32.gmra.mrb[0].mxu0 %v150
    %v324 = vpop.f32.mrb[0].mxu0
    %v325 = vadd.f32 %v232, %v324
    %v326 = vpop.f32.mrb[0].mxu0
    %327 = vmatprep.mubr.f32.mxu0 0.0
    %328 = vmatmul.mubr.f32.gmra.mrb[0].mxu0 %v151
    %v329 = vpop.f32.mrb[0].mxu0
    %v330 = vadd.f32 %v234, %v329
    %v331 = vpop.f32.mrb[0].mxu0
    %332 = vmatprep.mubr.f32.mxu0 0.0
    %333 = vmatmul.mubr.f32.gmra.mrb[0].mxu0 %v152
    %v334 = vpop.f32.mrb[0].mxu0
    %v335 = vadd.f32 %v236, %v334
    %v336 = vpop.f32.mrb[0].mxu0
    %337 = vmatprep.mubr.f32.mxu0 0.0
    %338 = vmatmul.mubr.f32.gmra.mrb[0].mxu0 %v153
    %v339 = vpop.f32.mrb[0].mxu0
    %v340 = vadd.f32 %v238, %v339
    %v341 = vpop.f32.mrb[0].mxu0
    %342 = vmatprep.mubr.f32.mxu0 0.0
    %343 = vmatmul.mubr.f32.gmra.mrb[0].mxu0 %v154
    %v344 = vpop.f32.mrb[0].mxu0
    %v345 = vadd.f32 %v240, %v344
    %v346 = vpop.f32.mrb[0].mxu0
    %347 = vmatprep.mubr.f32.mxu0 0.0
    %348 = vmatmul.mubr.f32.gmra.mrb[0].mxu0 %v155
    %v349 = vpop.f32.mrb[0].mxu0
    %v350 = vadd.f32 %v242, %v349
    %v351 = vpop.f32.mrb[0].mxu0
    %352 = vmatprep.mubr.f32.mxu0 0.0
    %353 = vmatmul.mubr.f32.gmra.mrb[0].mxu0 %v156
    %v354 = vpop.f32.mrb[0].mxu0
    %v355 = vadd.f32 %v244, %v354
    %v356 = vpop.f32.mrb[0].mxu0
    %357 = vdwg.mxu0
    %v358 = vld [vmem:[%s0 + $0x10] sm:$0xff]
    %v359 = vld [vmem:[%s0 + $0x30] sm:$0xff]
    %v360 = vld [vmem:[%s0 + $0x50] sm:$0xff]
    %v361 = vld [vmem:[%s0 + $0x70] sm:$0xff]
    %v362 = vld [vmem:[%s0 + $0x90] sm:$0xff]
    %v363 = vld [vmem:[%s0 + $0xb0] sm:$0xff]
    %v364 = vld [vmem:[%s0 + $0xd0] sm:$0xff]
    %v365 = vld [vmem:[%s0 + $0xf0] sm:$0xff]
    %366 = vrot.lane.b32.xlu0 %v20, 112
    %v367 = vpop.permute.xlu0 %366
    %368 = vrot.lane.b32.xlu0 %v21, 112
    %v369 = vpop.permute.xlu0 %368
    %370 = vrot.lane.b32.xlu0 %v22, 112
    %v371 = vpop.permute.xlu0 %370
    %372 = vrot.lane.b32.xlu0 %v23, 112
    %v373 = vpop.permute.xlu0 %372
    %374 = vrot.lane.b32.xlu0 %v24, 112
    %v375 = vpop.permute.xlu0 %374
    %376 = vrot.lane.b32.xlu0 %v25, 112
    %v377 = vpop.permute.xlu0 %376
    %378 = vrot.lane.b32.xlu0 %v26, 112
    %v379 = vpop.permute.xlu0 %378
    %380 = vrot.lane.b32.xlu0 %v27, 112
    %v381 = vpop.permute.xlu0 %380
    %382 = vrot.lane.b32.xlu0 %v28, 112
    %v383 = vpop.permute.xlu0 %382
    %384 = vrot.lane.b32.xlu0 %v29, 112
    %v385 = vpop.permute.xlu0 %384
    %386 = vrot.lane.b32.xlu0 %v30, 112
    %v387 = vpop.permute.xlu0 %386
    %388 = vrot.lane.b32.xlu0 %v31, 112
    %v389 = vpop.permute.xlu0 %388
    %390 = vrot.lane.b32.xlu0 %v32, 112
    %v391 = vpop.permute.xlu0 %390
    %392 = vrot.lane.b32.xlu0 %v33, 112
    %v393 = vpop.permute.xlu0 %392
    %394 = vrot.lane.b32.xlu0 %v34, 112
    %v395 = vpop.permute.xlu0 %394
    %396 = vrot.lane.b32.xlu0 %v35, 112
    %v397 = vpop.permute.xlu0 %396
    %414 = vrot.lane.b32.xlu0 %v36, 112
    %v415 = vpop.permute.xlu0 %414
    %416 = vrot.lane.b32.xlu0 %v37, 112
    %v417 = vpop.permute.xlu0 %416
    %418 = vrot.lane.b32.xlu0 %v38, 112
    %v419 = vpop.permute.xlu0 %418
    %420 = vrot.lane.b32.xlu0 %v39, 112
    %v421 = vpop.permute.xlu0 %420
    %422 = vrot.lane.b32.xlu0 %v40, 112
    %v423 = vpop.permute.xlu0 %422
    %424 = vrot.lane.b32.xlu0 %v41, 112
    %v425 = vpop.permute.xlu0 %424
    %426 = vrot.lane.b32.xlu0 %v42, 112
    %v427 = vpop.permute.xlu0 %426
    %428 = vrot.lane.b32.xlu0 %v43, 112
    %v429 = vpop.permute.xlu0 %428
    %438 = vmatprep.subr.mxu0 0.0
    %439 = vmatpush1.msra.mxu0 %v367
    %440 = vmatprep.subr.mxu0 0.0
    %441 = vmatpush1.msra.mxu0 %v369
    %442 = vmatprep.subr.mxu0 0.0
    %443 = vmatpush1.msra.mxu0 %v371
    %444 = vmatprep.subr.mxu0 0.0
    %445 = vmatpush1.msra.mxu0 %v373
    %446 = vmatprep.subr.mxu0 0.0
    %447 = vmatpush1.msra.mxu0 %v375
    %448 = vmatprep.subr.mxu0 0.0
    %449 = vmatpush1.msra.mxu0 %v377
    %450 = vmatprep.subr.mxu0 0.0
    %451 = vmatpush1.msra.mxu0 %v379
    %452 = vmatprep.subr.mxu0 0.0
    %453 = vmatpush1.msra.mxu0 %v381
    %454 = vmatprep.subr.mxu0 0.0
    %455 = vmatpush1.msra.mxu0 %v383
    %456 = vmatprep.subr.mxu0 0.0
    %457 = vmatpush1.msra.mxu0 %v385
    %458 = vmatprep.subr.mxu0 0.0
    %459 = vmatpush1.msra.mxu0 %v387
    %460 = vmatprep.subr.mxu0 0.0
    %461 = vmatpush1.msra.mxu0 %v389
    %462 = vmatprep.subr.mxu0 0.0
    %463 = vmatpush1.msra.mxu0 %v391
    %464 = vmatprep.subr.mxu0 0.0
    %465 = vmatpush1.msra.mxu0 %v393
    %466 = vmatprep.subr.mxu0 0.0
    %467 = vmatpush1.msra.mxu0 %v395
    %468 = vmatprep.subr.mxu0 0.0
    %469 = vmatpush1.msra.mxu0 %v397
    %470 = vmatprep.subr.mxu0 0.0
    %471 = vmatpush1.msra.mxu0 0.0
    %472 = vmatprep.subr.mxu0 0.0
    %473 = vmatpush1.msra.mxu0 0.0
    %474 = vmatprep.subr.mxu0 0.0
    %475 = vmatpush1.msra.mxu0 0.0
    %476 = vmatprep.subr.mxu0 0.0
    %477 = vmatpush1.msra.mxu0 0.0
    %478 = vmatprep.subr.mxu0 0.0
    %479 = vmatpush1.msra.mxu0 0.0
    %480 = vmatprep.subr.mxu0 0.0
    %481 = vmatpush1.msra.mxu0 0.0
    %482 = vmatprep.subr.mxu0 0.0
    %483 = vmatpush1.msra.mxu0 0.0
    %484 = vmatprep.subr.mxu0 0.0
    %485 = vmatpush1.msra.mxu0 0.0
    %486 = vmatprep.subr.mxu0 0.0
    %487 = vmatpush1.msra.mxu0 0.0
    %488 = vmatprep.subr.mxu0 0.0
    %489 = vmatpush1.msra.mxu0 0.0
    %490 = vmatprep.subr.mxu0 0.0
    %491 = vmatpush1.msra.mxu0 0.0
    %492 = vmatprep.subr.mxu0 0.0
    %493 = vmatpush1.msra.mxu0 0.0
    %494 = vmatprep.subr.mxu0 0.0
    %495 = vmatpush1.msra.mxu0 0.0
    %496 = vmatprep.subr.mxu0 0.0
    %497 = vmatpush1.msra.mxu0 0.0
    %498 = vmatprep.subr.mxu0 0.0
    %499 = vmatpush1.msra.mxu0 0.0
    %500 = vmatprep.subr.mxu0 0.0
    %501 = vmatpush1.msra.mxu0 0.0
    %502 = vmatprep.mubr.f32.mxu0 0.0
    %503 = vmatmul.mubr.f32.gmra.mrb[0].mxu0 %v358
    %v504 = vpop.f32.mrb[0].mxu0
    %v505 = vadd.f32 %v415, %v504
    %v506 = vpop.f32.mrb[0].mxu0
    %507 = vmatprep.mubr.f32.mxu0 0.0
    %508 = vmatmul.mubr.f32.gmra.mrb[0].mxu0 %v359
    %v509 = vpop.f32.mrb[0].mxu0
    %v510 = vadd.f32 %v417, %v509
    %v511 = vpop.f32.mrb[0].mxu0
    %512 = vmatprep.mubr.f32.mxu0 0.0
    %513 = vmatmul.mubr.f32.gmra.mrb[0].mxu0 %v360
    %v514 = vpop.f32.mrb[0].mxu0
    %v515 = vadd.f32 %v419, %v514
    %v516 = vpop.f32.mrb[0].mxu0
    %517 = vmatprep.mubr.f32.mxu0 0.0
    %518 = vmatmul.mubr.f32.gmra.mrb[0].mxu0 %v361
    %v519 = vpop.f32.mrb[0].mxu0
    %v520 = vadd.f32 %v421, %v519
    %v521 = vpop.f32.mrb[0].mxu0
    %522 = vmatprep.mubr.f32.mxu0 0.0
    %523 = vmatmul.mubr.f32.gmra.mrb[0].mxu0 %v362
    %v524 = vpop.f32.mrb[0].mxu0
    %v525 = vadd.f32 %v423, %v524
    %v526 = vpop.f32.mrb[0].mxu0
    %527 = vmatprep.mubr.f32.mxu0 0.0
    %528 = vmatmul.mubr.f32.gmra.mrb[0].mxu0 %v363
    %v529 = vpop.f32.mrb[0].mxu0
    %v530 = vadd.f32 %v425, %v529
    %v531 = vpop.f32.mrb[0].mxu0
    %532 = vmatprep.mubr.f32.mxu0 0.0
    %533 = vmatmul.mubr.f32.gmra.mrb[0].mxu0 %v364
    %v534 = vpop.f32.mrb[0].mxu0
    %v535 = vadd.f32 %v427, %v534
    %v536 = vpop.f32.mrb[0].mxu0
    %537 = vmatprep.mubr.f32.mxu0 0.0
    %538 = vmatmul.mubr.f32.gmra.mrb[0].mxu0 %v365
    %v539 = vpop.f32.mrb[0].mxu0
    %v540 = vadd.f32 %v429, %v539
    %v541 = vpop.f32.mrb[0].mxu0
    %542 = vdwg.mxu0
    %vm543 = vcmask 64512
    %v545 = vsel %vm543, %v111, 0
    %v548 = vsel %vm543, %v116, 0
    %v551 = vsel %vm543, %v121, 0
    %v554 = vsel %vm543, %v126, 0
    %v557 = vsel %vm543, %v131, 0
    %v560 = vsel %vm543, %v136, 0
    %v563 = vsel %vm543, %v141, 0
    %v566 = vsel %vm543, %v146, 0
    %v569 = vsel %vm543, %v320, 0
    %v572 = vsel %vm543, %v325, 0
    %v575 = vsel %vm543, %v330, 0
    %v578 = vsel %vm543, %v335, 0
    %v581 = vsel %vm543, %v340, 0
    %v584 = vsel %vm543, %v345, 0
    %v587 = vsel %vm543, %v350, 0
    %v590 = vsel %vm543, %v355, 0
    %592 = vmatprep.subr.mxu0 0.0
    %593 = vmatpush1.xpose.msra.mxu0 %v569
    %594 = vmatprep.subr.mxu0 0.0
    %595 = vmatpush1.xpose.msra.mxu0 %v572
    %596 = vmatprep.subr.mxu0 0.0
    %597 = vmatpush1.xpose.msra.mxu0 %v575
    %598 = vmatprep.subr.mxu0 0.0
    %599 = vmatpush1.xpose.msra.mxu0 %v578
    %600 = vmatprep.subr.mxu0 0.0
    %601 = vmatpush1.xpose.msra.mxu0 %v581
    %602 = vmatprep.subr.mxu0 0.0
    %603 = vmatpush1.xpose.msra.mxu0 %v584
    %604 = vmatprep.subr.mxu0 0.0
    %605 = vmatpush1.xpose.msra.mxu0 %v587
    %606 = vmatprep.subr.mxu0 0.0
    %607 = vmatpush1.xpose.msra.mxu0 %v590
    %608 = vmatprep.subr.mxu0 0.0
    %609 = vmatpush1.xpose.msra.mxu0 0.0
    %610 = vmatprep.subr.mxu0 0.0
    %611 = vmatpush1.xpose.msra.mxu0 0.0
    %612 = vmatprep.subr.mxu0 0.0
    %613 = vmatpush1.xpose.msra.mxu0 0.0
    %614 = vmatprep.subr.mxu0 0.0
    %615 = vmatpush1.xpose.msra.mxu0 0.0
    %616 = vmatprep.subr.mxu0 0.0
    %617 = vmatpush1.xpose.msra.mxu0 0.0
    %618 = vmatprep.subr.mxu0 0.0
    %619 = vmatpush1.xpose.msra.mxu0 0.0
    %620 = vmatprep.subr.mxu0 0.0
    %621 = vmatpush1.xpose.msra.mxu0 0.0
    %622 = vmatprep.subr.mxu0 0.0
    %623 = vmatpush1.xpose.msra.mxu0 0.0
    %624 = vmatprep.subr.mxu0 0.0
    %625 = vmatpush1.xpose.msra.mxu0 0.0
    %626 = vmatprep.subr.mxu0 0.0
    %627 = vmatpush1.xpose.msra.mxu0 0.0
    %628 = vmatprep.subr.mxu0 0.0
    %629 = vmatpush1.xpose.msra.mxu0 0.0
    %630 = vmatprep.subr.mxu0 0.0
    %631 = vmatpush1.xpose.msra.mxu0 0.0
    %632 = vmatprep.subr.mxu0 0.0
    %633 = vmatpush1.xpose.msra.mxu0 0.0
    %634 = vmatprep.subr.mxu0 0.0
    %635 = vmatpush1.xpose.msra.mxu0 0.0
    %636 = vmatprep.subr.mxu0 0.0
    %637 = vmatpush1.xpose.msra.mxu0 0.0
    %638 = vmatprep.subr.mxu0 0.0
    %639 = vmatpush1.xpose.msra.mxu0 0.0
    %640 = vmatprep.subr.mxu0 0.0
    %641 = vmatpush1.xpose.msra.mxu0 0.0
    %642 = vmatprep.subr.mxu0 0.0
    %643 = vmatpush1.xpose.msra.mxu0 0.0
    %644 = vmatprep.subr.mxu0 0.0
    %645 = vmatpush1.xpose.msra.mxu0 0.0
    %646 = vmatprep.subr.mxu0 0.0
    %647 = vmatpush1.xpose.msra.mxu0 0.0
    %648 = vmatprep.subr.mxu0 0.0
    %649 = vmatpush1.xpose.msra.mxu0 0.0
    %650 = vmatprep.subr.mxu0 0.0
    %651 = vmatpush1.xpose.msra.mxu0 0.0
    %652 = vmatprep.subr.mxu0 0.0
    %653 = vmatpush1.xpose.msra.mxu0 0.0
    %654 = vmatprep.subr.mxu0 0.0
    %655 = vmatpush1.xpose.msra.mxu0 0.0
    %656 = vmatprep.mubr.f32.mxu0 0.0
    %657 = vmatmul.mubr.f32.gmra.mrb[0].mxu0 %v545
    %v658 = vpop.f32.mrb[0].mxu0
    %v659 = vadd.f32 0.0, %v658
    %v660 = vpop.f32.mrb[0].mxu0
    %661 = vmatprep.mubr.f32.mxu0 0.0
    %662 = vmatmul.mubr.f32.gmra.mrb[0].mxu0 %v548
    %v663 = vpop.f32.mrb[0].mxu0
    %v664 = vadd.f32 0.0, %v663
    %v665 = vpop.f32.mrb[0].mxu0
    %666 = vmatprep.mubr.f32.mxu0 0.0
    %667 = vmatmul.mubr.f32.gmra.mrb[0].mxu0 %v551
    %v668 = vpop.f32.mrb[0].mxu0
    %v669 = vadd.f32 0.0, %v668
    %v670 = vpop.f32.mrb[0].mxu0
    %671 = vmatprep.mubr.f32.mxu0 0.0
    %672 = vmatmul.mubr.f32.gmra.mrb[0].mxu0 %v554
    %v673 = vpop.f32.mrb[0].mxu0
    %v674 = vadd.f32 0.0, %v673
    %v675 = vpop.f32.mrb[0].mxu0
    %676 = vmatprep.mubr.f32.mxu0 0.0
    %677 = vmatmul.mubr.f32.gmra.mrb[0].mxu0 %v557
    %v678 = vpop.f32.mrb[0].mxu0
    %v679 = vadd.f32 0.0, %v678
    %v680 = vpop.f32.mrb[0].mxu0
    %681 = vmatprep.mubr.f32.mxu0 0.0
    %682 = vmatmul.mubr.f32.gmra.mrb[0].mxu0 %v560
    %v683 = vpop.f32.mrb[0].mxu0
    %v684 = vadd.f32 0.0, %v683
    %v685 = vpop.f32.mrb[0].mxu0
    %686 = vmatprep.mubr.f32.mxu0 0.0
    %687 = vmatmul.mubr.f32.gmra.mrb[0].mxu0 %v563
    %v688 = vpop.f32.mrb[0].mxu0
    %v689 = vadd.f32 0.0, %v688
    %v690 = vpop.f32.mrb[0].mxu0
    %691 = vmatprep.mubr.f32.mxu0 0.0
    %692 = vmatmul.mubr.f32.gmra.mrb[0].mxu0 %v566
    %v693 = vpop.f32.mrb[0].mxu0
    %v694 = vadd.f32 0.0, %v693
    %v695 = vpop.f32.mrb[0].mxu0
    %696 = vdwg.mxu0
    %v697 = vld [vmem:[%s0 + $0x18] sm:$0xff]
    %v698 = vld [vmem:[%s0 + $0x38] sm:$0xff]
    %v699 = vld [vmem:[%s0 + $0x58] sm:$0xff]
    %v700 = vld [vmem:[%s0 + $0x78] sm:$0xff]
    %v701 = vld [vmem:[%s0 + $0x98] sm:$0xff]
    %v702 = vld [vmem:[%s0 + $0xb8] sm:$0xff]
    %v703 = vld [vmem:[%s0 + $0xd8] sm:$0xff]
    %v704 = vld [vmem:[%s0 + $0xf8] sm:$0xff]
    %v705 = vmul.f32 %v659, %v697
    %v706 = vmul.f32 %v664, %v698
    %v707 = vmul.f32 %v669, %v699
    %v708 = vmul.f32 %v674, %v700
    %v709 = vmul.f32 %v679, %v701
    %v710 = vmul.f32 %v684, %v702
    %v711 = vmul.f32 %v689, %v703
    %v712 = vmul.f32 %v694, %v704
    %721 = vrot.lane.b32.xlu0 %v697, 64
    %v722 = vpop.permute.xlu0 %721
    %723 = vrot.lane.b32.xlu0 %v698, 64
    %v724 = vpop.permute.xlu0 %723
    %725 = vrot.lane.b32.xlu0 %v699, 64
    %v726 = vpop.permute.xlu0 %725
    %727 = vrot.lane.b32.xlu0 %v700, 64
    %v728 = vpop.permute.xlu0 %727
    %729 = vrot.lane.b32.xlu0 %v701, 64
    %v730 = vpop.permute.xlu0 %729
    %731 = vrot.lane.b32.xlu0 %v702, 64
    %v732 = vpop.permute.xlu0 %731
    %733 = vrot.lane.b32.xlu0 %v703, 64
    %v734 = vpop.permute.xlu0 %733
    %735 = vrot.lane.b32.xlu0 %v704, 64
    %v736 = vpop.permute.xlu0 %735
    %v745 = vadd.f32 %v705, %v722
    %v746 = vadd.f32 %v706, %v724
    %v747 = vadd.f32 %v707, %v726
    %v748 = vadd.f32 %v708, %v728
    %v749 = vadd.f32 %v709, %v730
    %v750 = vadd.f32 %v710, %v732
    %v751 = vadd.f32 %v711, %v734
    %v752 = vadd.f32 %v712, %v736
    %vm753 = vcmask 523264
    %v754 = vsel %vm753, %v745, -inf
    %755 = vmax.xlane.f32.xlu0 %v754
    %v756 = vpop.xlane.xlu0 %755
    %v757 = vsel %vm753, %v746, -inf
    %758 = vmax.xlane.f32.xlu0 %v757
    %v759 = vpop.xlane.xlu0 %758
    %v760 = vsel %vm753, %v747, -inf
    %761 = vmax.xlane.f32.xlu0 %v760
    %v762 = vpop.xlane.xlu0 %761
    %v763 = vsel %vm753, %v748, -inf
    %764 = vmax.xlane.f32.xlu0 %v763
    %v765 = vpop.xlane.xlu0 %764
    %v766 = vsel %vm753, %v749, -inf
    %767 = vmax.xlane.f32.xlu0 %v766
    %v768 = vpop.xlane.xlu0 %767
    %v769 = vsel %vm753, %v750, -inf
    %770 = vmax.xlane.f32.xlu0 %v769
    %v771 = vpop.xlane.xlu0 %770
    %v772 = vsel %vm753, %v751, -inf
    %773 = vmax.xlane.f32.xlu0 %v772
    %v774 = vpop.xlane.xlu0 %773
    %v775 = vsel %vm753, %v752, -inf
    %776 = vmax.xlane.f32.xlu0 %v775
    %v777 = vpop.xlane.xlu0 %776
    %v778 = vsub.f32 %v745, %v756
    %v779 = vsub.f32 %v746, %v759
    %v780 = vsub.f32 %v747, %v762
    %v781 = vsub.f32 %v748, %v765
    %v782 = vsub.f32 %v749, %v768
    %v783 = vsub.f32 %v750, %v771
    %v784 = vsub.f32 %v751, %v774
    %v785 = vsub.f32 %v752, %v777
    %v786 = vmul.f32 %v778, 1.442695
    %v787 = vpow.pop %v786
    %v788 = vmul.f32 %v779, 1.442695
    %v789 = vpow.pop %v788
    %v790 = vmul.f32 %v780, 1.442695
    %v791 = vpow.pop %v790
    %v792 = vmul.f32 %v781, 1.442695
    %v793 = vpow.pop %v792
    %v794 = vmul.f32 %v782, 1.442695
    %v795 = vpow.pop %v794
    %v796 = vmul.f32 %v783, 1.442695
    %v797 = vpow.pop %v796
    %v798 = vmul.f32 %v784, 1.442695
    %v799 = vpow.pop %v798
    %v800 = vmul.f32 %v785, 1.442695
    %v801 = vpow.pop %v800
    %v802 = vsel %vm753, %v787, 0.0
    %803 = vadd.xlane.f32.xlu0 %v802
    %v804 = vpop.xlane.xlu0 %803
    %v805 = vsel %vm753, %v789, 0.0
    %806 = vadd.xlane.f32.xlu0 %v805
    %v807 = vpop.xlane.xlu0 %806
    %v808 = vsel %vm753, %v791, 0.0
    %809 = vadd.xlane.f32.xlu0 %v808
    %v810 = vpop.xlane.xlu0 %809
    %v811 = vsel %vm753, %v793, 0.0
    %812 = vadd.xlane.f32.xlu0 %v811
    %v813 = vpop.xlane.xlu0 %812
    %v814 = vsel %vm753, %v795, 0.0
    %815 = vadd.xlane.f32.xlu0 %v814
    %v816 = vpop.xlane.xlu0 %815
    %v817 = vsel %vm753, %v797, 0.0
    %818 = vadd.xlane.f32.xlu0 %v817
    %v819 = vpop.xlane.xlu0 %818
    %v820 = vsel %vm753, %v799, 0.0
    %821 = vadd.xlane.f32.xlu0 %v820
    %v822 = vpop.xlane.xlu0 %821
    %v823 = vsel %vm753, %v801, 0.0
    %824 = vadd.xlane.f32.xlu0 %v823
    %v825 = vpop.xlane.xlu0 %824
    %v826 = vrcp.pop %v804
    %v827 = vrcp.pop %v807
    %v828 = vrcp.pop %v810
    %v829 = vrcp.pop %v813
    %v830 = vrcp.pop %v816
    %v831 = vrcp.pop %v819
    %v832 = vrcp.pop %v822
    %v833 = vrcp.pop %v825
    %v834 = vmul.f32 %v804, %v826
    %v835 = vmul.f32 %v807, %v827
    %v836 = vmul.f32 %v810, %v828
    %v837 = vmul.f32 %v813, %v829
    %v838 = vmul.f32 %v816, %v830
    %v839 = vmul.f32 %v819, %v831
    %v840 = vmul.f32 %v822, %v832
    %v841 = vmul.f32 %v825, %v833
    %v842 = vsub.f32 2.0, %v834
    %v843 = vsub.f32 2.0, %v835
    %v844 = vsub.f32 2.0, %v836
    %v845 = vsub.f32 2.0, %v837
    %v846 = vsub.f32 2.0, %v838
    %v847 = vsub.f32 2.0, %v839
    %v848 = vsub.f32 2.0, %v840
    %v849 = vsub.f32 2.0, %v841
    %v850 = vmul.f32 %v826, %v842
    %v851 = vmul.f32 %v827, %v843
    %v852 = vmul.f32 %v828, %v844
    %v853 = vmul.f32 %v829, %v845
    %v854 = vmul.f32 %v830, %v846
    %v855 = vmul.f32 %v831, %v847
    %v856 = vmul.f32 %v832, %v848
    %v857 = vmul.f32 %v833, %v849
    %v859 = vsel %vm753, %v787, 0
    %v862 = vsel %vm753, %v789, 0
    %v865 = vsel %vm753, %v791, 0
    %v868 = vsel %vm753, %v793, 0
    %v871 = vsel %vm753, %v795, 0
    %v874 = vsel %vm753, %v797, 0
    %v877 = vsel %vm753, %v799, 0
    %v880 = vsel %vm753, %v801, 0
    %882 = vmatprep.subr.mxu0 0.0
    %883 = vmatpush1.msra.mxu0 %v505
    %884 = vmatprep.subr.mxu0 0.0
    %885 = vmatpush1.msra.mxu0 %v510
    %886 = vmatprep.subr.mxu0 0.0
    %887 = vmatpush1.msra.mxu0 %v515
    %888 = vmatprep.subr.mxu0 0.0
    %889 = vmatpush1.msra.mxu0 %v520
    %890 = vmatprep.subr.mxu0 0.0
    %891 = vmatpush1.msra.mxu0 %v525
    %892 = vmatprep.subr.mxu0 0.0
    %893 = vmatpush1.msra.mxu0 %v530
    %894 = vmatprep.subr.mxu0 0.0
    %895 = vmatpush1.msra.mxu0 %v535
    %896 = vmatprep.subr.mxu0 0.0
    %897 = vmatpush1.msra.mxu0 %v540
    %898 = vmatprep.subr.mxu0 0.0
    %899 = vmatpush1.msra.mxu0 0.0
    %900 = vmatprep.subr.mxu0 0.0
    %901 = vmatpush1.msra.mxu0 0.0
    %902 = vmatprep.subr.mxu0 0.0
    %903 = vmatpush1.msra.mxu0 0.0
    %904 = vmatprep.subr.mxu0 0.0
    %905 = vmatpush1.msra.mxu0 0.0
    %906 = vmatprep.subr.mxu0 0.0
    %907 = vmatpush1.msra.mxu0 0.0
    %908 = vmatprep.subr.mxu0 0.0
    %909 = vmatpush1.msra.mxu0 0.0
    %910 = vmatprep.subr.mxu0 0.0
    %911 = vmatpush1.msra.mxu0 0.0
    %912 = vmatprep.subr.mxu0 0.0
    %913 = vmatpush1.msra.mxu0 0.0
    %914 = vmatprep.subr.mxu0 0.0
    %915 = vmatpush1.msra.mxu0 0.0
    %916 = vmatprep.subr.mxu0 0.0
    %917 = vmatpush1.msra.mxu0 0.0
    %918 = vmatprep.subr.mxu0 0.0
    %919 = vmatpush1.msra.mxu0 0.0
    %920 = vmatprep.subr.mxu0 0.0
    %921 = vmatpush1.msra.mxu0 0.0
    %922 = vmatprep.subr.mxu0 0.0
    %923 = vmatpush1.msra.mxu0 0.0
    %924 = vmatprep.subr.mxu0 0.0
    %925 = vmatpush1.msra.mxu0 0.0
    %926 = vmatprep.subr.mxu0 0.0
    %927 = vmatpush1.msra.mxu0 0.0
    %928 = vmatprep.subr.mxu0 0.0
    %929 = vmatpush1.msra.mxu0 0.0
    %930 = vmatprep.subr.mxu0 0.0
    %931 = vmatpush1.msra.mxu0 0.0
    %932 = vmatprep.subr.mxu0 0.0
    %933 = vmatpush1.msra.mxu0 0.0
    %934 = vmatprep.subr.mxu0 0.0
    %935 = vmatpush1.msra.mxu0 0.0
    %936 = vmatprep.subr.mxu0 0.0
    %937 = vmatpush1.msra.mxu0 0.0
    %938 = vmatprep.subr.mxu0 0.0
    %939 = vmatpush1.msra.mxu0 0.0
    %940 = vmatprep.subr.mxu0 0.0
    %941 = vmatpush1.msra.mxu0 0.0
    %942 = vmatprep.subr.mxu0 0.0
    %943 = vmatpush1.msra.mxu0 0.0
    %944 = vmatprep.subr.mxu0 0.0
    %945 = vmatpush1.msra.mxu0 0.0
    %946 = vmatprep.mubr.f32.mxu0 0.0
    %947 = vmatmul.mubr.f32.gmra.mrb[0].mxu0 %v859
    %v948 = vpop.f32.mrb[0].mxu0
    %v949 = vadd.f32 0.0, %v948
    %v950 = vpop.f32.mrb[0].mxu0
    %951 = vmatprep.mubr.f32.mxu0 0.0
    %952 = vmatmul.mubr.f32.gmra.mrb[0].mxu0 %v862
    %v953 = vpop.f32.mrb[0].mxu0
    %v954 = vadd.f32 0.0, %v953
    %v955 = vpop.f32.mrb[0].mxu0
    %956 = vmatprep.mubr.f32.mxu0 0.0
    %957 = vmatmul.mubr.f32.gmra.mrb[0].mxu0 %v865
    %v958 = vpop.f32.mrb[0].mxu0
    %v959 = vadd.f32 0.0, %v958
    %v960 = vpop.f32.mrb[0].mxu0
    %961 = vmatprep.mubr.f32.mxu0 0.0
    %962 = vmatmul.mubr.f32.gmra.mrb[0].mxu0 %v868
    %v963 = vpop.f32.mrb[0].mxu0
    %v964 = vadd.f32 0.0, %v963
    %v965 = vpop.f32.mrb[0].mxu0
    %966 = vmatprep.mubr.f32.mxu0 0.0
    %967 = vmatmul.mubr.f32.gmra.mrb[0].mxu0 %v871
    %v968 = vpop.f32.mrb[0].mxu0
    %v969 = vadd.f32 0.0, %v968
    %v970 = vpop.f32.mrb[0].mxu0
    %971 = vmatprep.mubr.f32.mxu0 0.0
    %972 = vmatmul.mubr.f32.gmra.mrb[0].mxu0 %v874
    %v973 = vpop.f32.mrb[0].mxu0
    %v974 = vadd.f32 0.0, %v973
    %v975 = vpop.f32.mrb[0].mxu0
    %976 = vmatprep.mubr.f32.mxu0 0.0
    %977 = vmatmul.mubr.f32.gmra.mrb[0].mxu0 %v877
    %v978 = vpop.f32.mrb[0].mxu0
    %v979 = vadd.f32 0.0, %v978
    %v980 = vpop.f32.mrb[0].mxu0
    %981 = vmatprep.mubr.f32.mxu0 0.0
    %982 = vmatmul.mubr.f32.gmra.mrb[0].mxu0 %v880
    %v983 = vpop.f32.mrb[0].mxu0
    %v984 = vadd.f32 0.0, %v983
    %v985 = vpop.f32.mrb[0].mxu0
    %986 = vdwg.mxu0
    %v987 = vmul.f32 %v949, %v850
    %v988 = vmul.f32 %v954, %v851
    %v989 = vmul.f32 %v959, %v852
    %v990 = vmul.f32 %v964, %v853
    %v991 = vmul.f32 %v969, %v854
    %v992 = vmul.f32 %v974, %v855
    %v993 = vmul.f32 %v979, %v856
    %v994 = vmul.f32 %v984, %v857
    %v995 = vld [vmem:[%s0] sm:$0xff]
    %v996 = vld [vmem:[%s0 + $0x20] sm:$0xff]
    %v997 = vld [vmem:[%s1 + $0xe0] sm:$0x1]
    %v998 = vlaneseq
    %v999 = vshrl.u32 %v998, 7
    %v1000 = vsub.s32 0, %v999
    %v1001 = vrot.slane %v997, %v1000
    %v1002 = vadd.f32 %v995, %v1001
    %v1003 = vadd.f32 %v996, %v1001
    %v1004 = vld [vmem:[%s1 + $0xc0] sm:$0xff]
    %v1006 = vsel %vm543, %v987, 0
    %v1009 = vsel %vm543, %v988, 0
    %1011 = vmatprep.subr.mxu0 0.0
    %1012 = vmatpush1.msra.mxu0 %v1004
    %1013 = vmatprep.subr.mxu0 0.0
    %1014 = vmatpush1.msra.mxu0 0.0
    %1015 = vmatprep.subr.mxu0 0.0
    %1016 = vmatpush1.msra.mxu0 0.0
    %1017 = vmatprep.subr.mxu0 0.0
    %1018 = vmatpush1.msra.mxu0 0.0
    %1019 = vmatprep.subr.mxu0 0.0
    %1020 = vmatpush1.msra.mxu0 0.0
    %1021 = vmatprep.subr.mxu0 0.0
    %1022 = vmatpush1.msra.mxu0 0.0
    %1023 = vmatprep.subr.mxu0 0.0
    %1024 = vmatpush1.msra.mxu0 0.0
    %1025 = vmatprep.subr.mxu0 0.0
    %1026 = vmatpush1.msra.mxu0 0.0
    %1027 = vmatprep.subr.mxu0 0.0
    %1028 = vmatpush1.msra.mxu0 0.0
    %1029 = vmatprep.subr.mxu0 0.0
    %1030 = vmatpush1.msra.mxu0 0.0
    %1031 = vmatprep.subr.mxu0 0.0
    %1032 = vmatpush1.msra.mxu0 0.0
    %1033 = vmatprep.subr.mxu0 0.0
    %1034 = vmatpush1.msra.mxu0 0.0
    %1035 = vmatprep.subr.mxu0 0.0
    %1036 = vmatpush1.msra.mxu0 0.0
    %1037 = vmatprep.subr.mxu0 0.0
    %1038 = vmatpush1.msra.mxu0 0.0
    %1039 = vmatprep.subr.mxu0 0.0
    %1040 = vmatpush1.msra.mxu0 0.0
    %1041 = vmatprep.subr.mxu0 0.0
    %1042 = vmatpush1.msra.mxu0 0.0
    %1043 = vmatprep.subr.mxu0 0.0
    %1044 = vmatpush1.msra.mxu0 0.0
    %1045 = vmatprep.subr.mxu0 0.0
    %1046 = vmatpush1.msra.mxu0 0.0
    %1047 = vmatprep.subr.mxu0 0.0
    %1048 = vmatpush1.msra.mxu0 0.0
    %1049 = vmatprep.subr.mxu0 0.0
    %1050 = vmatpush1.msra.mxu0 0.0
    %1051 = vmatprep.subr.mxu0 0.0
    %1052 = vmatpush1.msra.mxu0 0.0
    %1053 = vmatprep.subr.mxu0 0.0
    %1054 = vmatpush1.msra.mxu0 0.0
    %1055 = vmatprep.subr.mxu0 0.0
    %1056 = vmatpush1.msra.mxu0 0.0
    %1057 = vmatprep.subr.mxu0 0.0
    %1058 = vmatpush1.msra.mxu0 0.0
    %1059 = vmatprep.subr.mxu0 0.0
    %1060 = vmatpush1.msra.mxu0 0.0
    %1061 = vmatprep.subr.mxu0 0.0
    %1062 = vmatpush1.msra.mxu0 0.0
    %1063 = vmatprep.subr.mxu0 0.0
    %1064 = vmatpush1.msra.mxu0 0.0
    %1065 = vmatprep.subr.mxu0 0.0
    %1066 = vmatpush1.msra.mxu0 0.0
    %1067 = vmatprep.subr.mxu0 0.0
    %1068 = vmatpush1.msra.mxu0 0.0
    %1069 = vmatprep.subr.mxu0 0.0
    %1070 = vmatpush1.msra.mxu0 0.0
    %1071 = vmatprep.subr.mxu0 0.0
    %1072 = vmatpush1.msra.mxu0 0.0
    %1073 = vmatprep.subr.mxu0 0.0
    %1074 = vmatpush1.msra.mxu0 0.0
    %1075 = vmatprep.mubr.f32.mxu0 0.0
    %1076 = vmatmul.mubr.f32.gmra.mrb[0].mxu0 %v1006
    %v1077 = vpop.f32.mrb[0].mxu0
    %v1078 = vadd.f32 0.0, %v1077
    %v1079 = vpop.f32.mrb[0].mxu0
    %1080 = vmatprep.mubr.f32.mxu0 0.0
    %1081 = vmatmul.mubr.f32.gmra.mrb[0].mxu0 %v1009
    %v1082 = vpop.f32.mrb[0].mxu0
    %v1083 = vadd.f32 0.0, %v1082
    %v1084 = vpop.f32.mrb[0].mxu0
    %1085 = vdwg.mxu0
    %v1086 = vadd.f32 %v1002, %v1078
    %v1087 = vadd.f32 %v1003, %v1083
    %v1088 = vld [vmem:[%s1 + $0xc8] sm:$0xff]
    %v1090 = vsel %vm543, %v989, 0
    %v1093 = vsel %vm543, %v990, 0
    %1095 = vmatprep.subr.mxu0 0.0
    %1096 = vmatpush1.msra.mxu0 %v1088
    %1097 = vmatprep.subr.mxu0 0.0
    %1098 = vmatpush1.msra.mxu0 0.0
    %1099 = vmatprep.subr.mxu0 0.0
    %1100 = vmatpush1.msra.mxu0 0.0
    %1101 = vmatprep.subr.mxu0 0.0
    %1102 = vmatpush1.msra.mxu0 0.0
    %1103 = vmatprep.subr.mxu0 0.0
    %1104 = vmatpush1.msra.mxu0 0.0
    %1105 = vmatprep.subr.mxu0 0.0
    %1106 = vmatpush1.msra.mxu0 0.0
    %1107 = vmatprep.subr.mxu0 0.0
    %1108 = vmatpush1.msra.mxu0 0.0
    %1109 = vmatprep.subr.mxu0 0.0
    %1110 = vmatpush1.msra.mxu0 0.0
    %1111 = vmatprep.subr.mxu0 0.0
    %1112 = vmatpush1.msra.mxu0 0.0
    %1113 = vmatprep.subr.mxu0 0.0
    %1114 = vmatpush1.msra.mxu0 0.0
    %1115 = vmatprep.subr.mxu0 0.0
    %1116 = vmatpush1.msra.mxu0 0.0
    %1117 = vmatprep.subr.mxu0 0.0
    %1118 = vmatpush1.msra.mxu0 0.0
    %1119 = vmatprep.subr.mxu0 0.0
    %1120 = vmatpush1.msra.mxu0 0.0
    %1121 = vmatprep.subr.mxu0 0.0
    %1122 = vmatpush1.msra.mxu0 0.0
    %1123 = vmatprep.subr.mxu0 0.0
    %1124 = vmatpush1.msra.mxu0 0.0
    %1125 = vmatprep.subr.mxu0 0.0
    %1126 = vmatpush1.msra.mxu0 0.0
    %1127 = vmatprep.subr.mxu0 0.0
    %1128 = vmatpush1.msra.mxu0 0.0
    %1129 = vmatprep.subr.mxu0 0.0
    %1130 = vmatpush1.msra.mxu0 0.0
    %1131 = vmatprep.subr.mxu0 0.0
    %1132 = vmatpush1.msra.mxu0 0.0
    %1133 = vmatprep.subr.mxu0 0.0
    %1134 = vmatpush1.msra.mxu0 0.0
    %1135 = vmatprep.subr.mxu0 0.0
    %1136 = vmatpush1.msra.mxu0 0.0
    %1137 = vmatprep.subr.mxu0 0.0
    %1138 = vmatpush1.msra.mxu0 0.0
    %1139 = vmatprep.subr.mxu0 0.0
    %1140 = vmatpush1.msra.mxu0 0.0
    %1141 = vmatprep.subr.mxu0 0.0
    %1142 = vmatpush1.msra.mxu0 0.0
    %1143 = vmatprep.subr.mxu0 0.0
    %1144 = vmatpush1.msra.mxu0 0.0
    %1145 = vmatprep.subr.mxu0 0.0
    %1146 = vmatpush1.msra.mxu0 0.0
    %1147 = vmatprep.subr.mxu0 0.0
    %1148 = vmatpush1.msra.mxu0 0.0
    %1149 = vmatprep.subr.mxu0 0.0
    %1150 = vmatpush1.msra.mxu0 0.0
    %1151 = vmatprep.subr.mxu0 0.0
    %1152 = vmatpush1.msra.mxu0 0.0
    %1153 = vmatprep.subr.mxu0 0.0
    %1154 = vmatpush1.msra.mxu0 0.0
    %1155 = vmatprep.subr.mxu0 0.0
    %1156 = vmatpush1.msra.mxu0 0.0
    %1157 = vmatprep.subr.mxu0 0.0
    %1158 = vmatpush1.msra.mxu0 0.0
    %1159 = vmatprep.mubr.f32.mxu0 0.0
    %1160 = vmatmul.mubr.f32.gmra.mrb[0].mxu0 %v1090
    %v1161 = vpop.f32.mrb[0].mxu0
    %v1162 = vadd.f32 0.0, %v1161
    %v1163 = vpop.f32.mrb[0].mxu0
    %1164 = vmatprep.mubr.f32.mxu0 0.0
    %1165 = vmatmul.mubr.f32.gmra.mrb[0].mxu0 %v1093
    %v1166 = vpop.f32.mrb[0].mxu0
    %v1167 = vadd.f32 0.0, %v1166
    %v1168 = vpop.f32.mrb[0].mxu0
    %1169 = vdwg.mxu0
    %v1170 = vadd.f32 %v1086, %v1162
    %v1171 = vadd.f32 %v1087, %v1167
    %v1172 = vld [vmem:[%s1 + $0xd0] sm:$0xff]
    %v1174 = vsel %vm543, %v991, 0
    %v1177 = vsel %vm543, %v992, 0
    %1179 = vmatprep.subr.mxu0 0.0
    %1180 = vmatpush1.msra.mxu0 %v1172
    %1181 = vmatprep.subr.mxu0 0.0
    %1182 = vmatpush1.msra.mxu0 0.0
    %1183 = vmatprep.subr.mxu0 0.0
    %1184 = vmatpush1.msra.mxu0 0.0
    %1185 = vmatprep.subr.mxu0 0.0
    %1186 = vmatpush1.msra.mxu0 0.0
    %1187 = vmatprep.subr.mxu0 0.0
    %1188 = vmatpush1.msra.mxu0 0.0
    %1189 = vmatprep.subr.mxu0 0.0
    %1190 = vmatpush1.msra.mxu0 0.0
    %1191 = vmatprep.subr.mxu0 0.0
    %1192 = vmatpush1.msra.mxu0 0.0
    %1193 = vmatprep.subr.mxu0 0.0
    %1194 = vmatpush1.msra.mxu0 0.0
    %1195 = vmatprep.subr.mxu0 0.0
    %1196 = vmatpush1.msra.mxu0 0.0
    %1197 = vmatprep.subr.mxu0 0.0
    %1198 = vmatpush1.msra.mxu0 0.0
    %1199 = vmatprep.subr.mxu0 0.0
    %1200 = vmatpush1.msra.mxu0 0.0
    %1201 = vmatprep.subr.mxu0 0.0
    %1202 = vmatpush1.msra.mxu0 0.0
    %1203 = vmatprep.subr.mxu0 0.0
    %1204 = vmatpush1.msra.mxu0 0.0
    %1205 = vmatprep.subr.mxu0 0.0
    %1206 = vmatpush1.msra.mxu0 0.0
    %1207 = vmatprep.subr.mxu0 0.0
    %1208 = vmatpush1.msra.mxu0 0.0
    %1209 = vmatprep.subr.mxu0 0.0
    %1210 = vmatpush1.msra.mxu0 0.0
    %1211 = vmatprep.subr.mxu0 0.0
    %1212 = vmatpush1.msra.mxu0 0.0
    %1213 = vmatprep.subr.mxu0 0.0
    %1214 = vmatpush1.msra.mxu0 0.0
    %1215 = vmatprep.subr.mxu0 0.0
    %1216 = vmatpush1.msra.mxu0 0.0
    %1217 = vmatprep.subr.mxu0 0.0
    %1218 = vmatpush1.msra.mxu0 0.0
    %1219 = vmatprep.subr.mxu0 0.0
    %1220 = vmatpush1.msra.mxu0 0.0
    %1221 = vmatprep.subr.mxu0 0.0
    %1222 = vmatpush1.msra.mxu0 0.0
    %1223 = vmatprep.subr.mxu0 0.0
    %1224 = vmatpush1.msra.mxu0 0.0
    %1225 = vmatprep.subr.mxu0 0.0
    %1226 = vmatpush1.msra.mxu0 0.0
    %1227 = vmatprep.subr.mxu0 0.0
    %1228 = vmatpush1.msra.mxu0 0.0
    %1229 = vmatprep.subr.mxu0 0.0
    %1230 = vmatpush1.msra.mxu0 0.0
    %1231 = vmatprep.subr.mxu0 0.0
    %1232 = vmatpush1.msra.mxu0 0.0
    %1233 = vmatprep.subr.mxu0 0.0
    %1234 = vmatpush1.msra.mxu0 0.0
    %1235 = vmatprep.subr.mxu0 0.0
    %1236 = vmatpush1.msra.mxu0 0.0
    %1237 = vmatprep.subr.mxu0 0.0
    %1238 = vmatpush1.msra.mxu0 0.0
    %1239 = vmatprep.subr.mxu0 0.0
    %1240 = vmatpush1.msra.mxu0 0.0
    %1241 = vmatprep.subr.mxu0 0.0
    %1242 = vmatpush1.msra.mxu0 0.0
    %1243 = vmatprep.mubr.f32.mxu0 0.0
    %1244 = vmatmul.mubr.f32.gmra.mrb[0].mxu0 %v1174
    %v1245 = vpop.f32.mrb[0].mxu0
    %v1246 = vadd.f32 0.0, %v1245
    %v1247 = vpop.f32.mrb[0].mxu0
    %1248 = vmatprep.mubr.f32.mxu0 0.0
    %1249 = vmatmul.mubr.f32.gmra.mrb[0].mxu0 %v1177
    %v1250 = vpop.f32.mrb[0].mxu0
    %v1251 = vadd.f32 0.0, %v1250
    %v1252 = vpop.f32.mrb[0].mxu0
    %1253 = vdwg.mxu0
    %v1254 = vadd.f32 %v1170, %v1246
    %v1255 = vadd.f32 %v1171, %v1251
    %v1256 = vld [vmem:[%s1 + $0xd8] sm:$0xff]
    %v1258 = vsel %vm543, %v993, 0
    %v1261 = vsel %vm543, %v994, 0
    %1263 = vmatprep.subr.mxu0 0.0
    %1264 = vmatpush1.msra.mxu0 %v1256
    %1265 = vmatprep.subr.mxu0 0.0
    %1266 = vmatpush1.msra.mxu0 0.0
    %1267 = vmatprep.subr.mxu0 0.0
    %1268 = vmatpush1.msra.mxu0 0.0
    %1269 = vmatprep.subr.mxu0 0.0
    %1270 = vmatpush1.msra.mxu0 0.0
    %1271 = vmatprep.subr.mxu0 0.0
    %1272 = vmatpush1.msra.mxu0 0.0
    %1273 = vmatprep.subr.mxu0 0.0
    %1274 = vmatpush1.msra.mxu0 0.0
    %1275 = vmatprep.subr.mxu0 0.0
    %1276 = vmatpush1.msra.mxu0 0.0
    %1277 = vmatprep.subr.mxu0 0.0
    %1278 = vmatpush1.msra.mxu0 0.0
    %1279 = vmatprep.subr.mxu0 0.0
    %1280 = vmatpush1.msra.mxu0 0.0
    %1281 = vmatprep.subr.mxu0 0.0
    %1282 = vmatpush1.msra.mxu0 0.0
    %1283 = vmatprep.subr.mxu0 0.0
    %1284 = vmatpush1.msra.mxu0 0.0
    %1285 = vmatprep.subr.mxu0 0.0
    %1286 = vmatpush1.msra.mxu0 0.0
    %1287 = vmatprep.subr.mxu0 0.0
    %1288 = vmatpush1.msra.mxu0 0.0
    %1289 = vmatprep.subr.mxu0 0.0
    %1290 = vmatpush1.msra.mxu0 0.0
    %1291 = vmatprep.subr.mxu0 0.0
    %1292 = vmatpush1.msra.mxu0 0.0
    %1293 = vmatprep.subr.mxu0 0.0
    %1294 = vmatpush1.msra.mxu0 0.0
    %1295 = vmatprep.subr.mxu0 0.0
    %1296 = vmatpush1.msra.mxu0 0.0
    %1297 = vmatprep.subr.mxu0 0.0
    %1298 = vmatpush1.msra.mxu0 0.0
    %1299 = vmatprep.subr.mxu0 0.0
    %1300 = vmatpush1.msra.mxu0 0.0
    %1301 = vmatprep.subr.mxu0 0.0
    %1302 = vmatpush1.msra.mxu0 0.0
    %1303 = vmatprep.subr.mxu0 0.0
    %1304 = vmatpush1.msra.mxu0 0.0
    %1305 = vmatprep.subr.mxu0 0.0
    %1306 = vmatpush1.msra.mxu0 0.0
    %1307 = vmatprep.subr.mxu0 0.0
    %1308 = vmatpush1.msra.mxu0 0.0
    %1309 = vmatprep.subr.mxu0 0.0
    %1310 = vmatpush1.msra.mxu0 0.0
    %1311 = vmatprep.subr.mxu0 0.0
    %1312 = vmatpush1.msra.mxu0 0.0
    %1313 = vmatprep.subr.mxu0 0.0
    %1314 = vmatpush1.msra.mxu0 0.0
    %1315 = vmatprep.subr.mxu0 0.0
    %1316 = vmatpush1.msra.mxu0 0.0
    %1317 = vmatprep.subr.mxu0 0.0
    %1318 = vmatpush1.msra.mxu0 0.0
    %1319 = vmatprep.subr.mxu0 0.0
    %1320 = vmatpush1.msra.mxu0 0.0
    %1321 = vmatprep.subr.mxu0 0.0
    %1322 = vmatpush1.msra.mxu0 0.0
    %1323 = vmatprep.subr.mxu0 0.0
    %1324 = vmatpush1.msra.mxu0 0.0
    %1325 = vmatprep.subr.mxu0 0.0
    %1326 = vmatpush1.msra.mxu0 0.0
    %1327 = vmatprep.mubr.f32.mxu0 0.0
    %1328 = vmatmul.mubr.f32.gmra.mrb[0].mxu0 %v1258
    %v1329 = vpop.f32.mrb[0].mxu0
    %v1330 = vadd.f32 0.0, %v1329
    %v1331 = vpop.f32.mrb[0].mxu0
    %1332 = vmatprep.mubr.f32.mxu0 0.0
    %1333 = vmatmul.mubr.f32.gmra.mrb[0].mxu0 %v1261
    %v1334 = vpop.f32.mrb[0].mxu0
    %v1335 = vadd.f32 0.0, %v1334
    %v1336 = vpop.f32.mrb[0].mxu0
    %1337 = vdwg.mxu0
    %v1338 = vadd.f32 %v1254, %v1330
    %v1339 = vadd.f32 %v1255, %v1335
    %vm1340 = vcmask 261120
    %v1341 = vsel %vm1340, %v1338, 0.0
    %1342 = vadd.xlane.f32.xlu0 %v1341
    %v1343 = vpop.xlane.xlu0 %1342
    %v1344 = vsel %vm1340, %v1339, 0.0
    %1345 = vadd.xlane.f32.xlu0 %v1344
    %v1346 = vpop.xlane.xlu0 %1345
    %v1347 = vrcp.pop 32.0
    %v1348 = vmul.f32 %v1343, %v1347
    %v1349 = vmul.f32 %v1346, %v1347
    %v1350 = vsub.f32 %v1338, %v1348
    %v1351 = vsub.f32 %v1339, %v1349
    %v1352 = vmul.f32 %v1350, %v1350
    %v1353 = vmul.f32 %v1351, %v1351
    %v1354 = vsel %vm1340, %v1352, 0.0
    %1355 = vadd.xlane.f32.xlu0 %v1354
    %v1356 = vpop.xlane.xlu0 %1355
    %v1357 = vsel %vm1340, %v1353, 0.0
    %1358 = vadd.xlane.f32.xlu0 %v1357
    %v1359 = vpop.xlane.xlu0 %1358
    %v1360 = vmul.f32 %v1356, %v1347
    %v1361 = vmul.f32 %v1359, %v1347
    %v1362 = vadd.f32 %v1360, 1e-05
    %v1363 = vadd.f32 %v1361, 1e-05
    %v1364 = vrsqrt.pop %v1362
    %v1365 = vrsqrt.pop %v1363
    %v1366 = vmul.f32 %v1350, %v1364
    %v1367 = vmul.f32 %v1351, %v1365
    %v1368 = vld [vmem:[%s1 + $0xe1] sm:$0x1]
    %v1369 = vlaneseq
    %v1370 = vshrl.u32 %v1369, 7
    %v1371 = vsub.s32 0, %v1370
    %v1372 = vrot.slane %v1368, %v1371
    %v1373 = vmul.f32 %v1366, %v1372
    %v1374 = vmul.f32 %v1367, %v1372
    %v1375 = vld [vmem:[%s1 + $0xe2] sm:$0x1]
    %v1376 = vlaneseq
    %v1377 = vshrl.u32 %v1376, 7
    %v1378 = vsub.s32 0, %v1377
    %v1379 = vrot.slane %v1375, %v1378
    %v1380 = vadd.f32 %v1373, %v1379
    %v1381 = vadd.f32 %v1374, %v1379
    %1382 = vst.msk [vmem:[#allocation2] sm:$0xff] %vm1340, %v1380
    %1383 = vst.msk [vmem:[#allocation2 + $0x8] sm:$0xff] %vm1340, %v1381
    // Predicated region
    $region10: #{multi_head_attention.1} parent=1 // pred_check
      _
    $region11: #{multi_head_attention.1} parent=1 // pred_check_branch
      %1385 = sbr.rel (0) target = $region13
    $region12: #{multi_head_attention.1} parent=1 // pred_region
      %s1387 = ssub.s32 256, 256
      %1388 = vsyncadd [#allocation3], %s1387
      %s1389 = sshll.u32 [#allocation2], 4
      %s1390 = int_to_ptr.vmem [resolvable:$true] %s1389
      %1395 = dma.vmem_to_hbm [thread:$0]  %s1390, 256, %s2, [#allocation3], 128, 128, 8
    $region13: #{multi_head_attention.1} parent=1 // pred_fallthru
      _
    // Predicated region
    $region14: #{multi_head_attention.1} parent=1 // pred_check
      _
    $region15: #{multi_head_attention.1} parent=1 // pred_check_branch
      %1397 = sbr.rel (0) target = $region17
    $region16: #{multi_head_attention.1} parent=1 // pred_region
      %1398 = dma.done [#allocation3], 256
    $region17: #{multi_head_attention.1} parent=1 // pred_fallthru
      _
    %1399 = vsyncpa [#allocation3], 1

</llo_original>
